<compile_context>
chip_gen: v5e
topology: v5e:2x2
jax: 0.10.0
libtpu: 0.0.40
codegen_flags: <defaults>
</compile_context>

<pallas_src>
import functools

import jax
import jax.numpy as jnp
from jax.experimental import pallas as pl
from jax.experimental.pallas import tpu as pltpu

HIDDEN = 768
OUT_PAD = 128     # lane-dense output width
TK = 512          # K tile (multiple of 128 for v5e MXU, 256 for v6e/v7x MXU)


def head_kernel(x_ref, w3_ref, b3_ref, w4_ref, b4_ref, out_ref, acc_ref, *, o1):
    # x_ref   : [TB, TK]        bf16   (activations, K on lanes)
    # w3_ref  : [OP, TK]        bf16   (l3 weight, K on lanes, OP = pad8(O1))
    # b3_ref  : [1, OP]         f32    (zeros beyond O1)
    # w4_ref  : [1, OP]         f32    (l4 weight row, zeros beyond O1)
    # b4_ref  : [1, 1]          f32    (SMEM scalar)
    # out_ref : [TB, OUT_PAD]   f32    lanes 0..O1-1 = multi, lane O1 = single
    # acc_ref : [TB, OP]        f32    K-accumulator scratch
    k = pl.program_id(1)

    @pl.when(k == 0)
    def _init():
        acc_ref[...] = jnp.zeros_like(acc_ref)

    # l3 partial matmul over this K tile: x @ w3.T  (f32 accumulate on MXU)
    acc_ref[...] += jax.lax.dot_general(
        x_ref[...], w3_ref[...],
        dimension_numbers=(((1,), (1,)), ((), ())),
        preferred_element_type=jnp.float32,
    )

    @pl.when(k == pl.num_programs(1) - 1)
    def _finalize():
        multi = acc_ref[...] + b3_ref[...]                       # [TB, OP] f32
        # l4 as a VPU/XLU lane-reduction instead of a 1-wide MXU matmul.
        single = (jnp.sum(multi * w4_ref[...], axis=-1, keepdims=True)
                  + b4_ref[0, 0])                                # [TB, 1]
        col = jax.lax.broadcasted_iota(jnp.int32, multi.shape, 1)
        # lanes < O1: multi ; lane O1: single ; lanes > O1: zero (padded rows)
        head = jnp.where(col == o1, single, multi)               # [TB, OP]
        out_ref[...] = jnp.zeros_like(out_ref)                   # lane-dense fill
        out_ref[:, : head.shape[1]] = head


def hierarchical_head(x2, w3, b3, w4, b4, *, num_outputs):
    """x2: [B, K] f32/bf16.  w3: [O1, K].  Returns [B, num_outputs] f32."""
    B, K = x2.shape
    O1 = num_outputs - 1
    OP = 8 * pl.cdiv(O1, 8)                  # w3 rows padded to sublane multiple
    K_pad = TK * pl.cdiv(K, TK)

    if B <= 128:
        B_pad = 8 * pl.cdiv(B, 8)
        TB = B_pad
    else:
        B_pad = 128 * pl.cdiv(B, 128)
        TB = 128

    # Pad + cast the streamed operands (zero padding is a mathematical no-op).
    x_p = jnp.zeros((B_pad, K_pad), jnp.bfloat16).at[:B, :K].set(
        x2.astype(jnp.bfloat16))
    w3_p = jnp.zeros((OP, K_pad), jnp.bfloat16).at[:O1, :K].set(
        w3.astype(jnp.bfloat16))
    b3_p = jnp.zeros((1, OP), jnp.float32).at[0, :O1].set(b3.astype(jnp.float32))
    w4_p = jnp.zeros((1, OP), jnp.float32).at[0, :O1].set(w4.astype(jnp.float32))
    b4_p = jnp.asarray(b4, jnp.float32).reshape(1, 1)

    grid = (B_pad // TB, K_pad // TK)

    out_padded = pl.pallas_call(
        functools.partial(head_kernel, o1=O1),
        out_shape=jax.ShapeDtypeStruct((B_pad, OUT_PAD), jnp.float32),
        grid=grid,
        in_specs=[
            pl.BlockSpec((TB, TK), lambda b, k: (b, k)),          # x tile
            pl.BlockSpec((OP, TK), lambda b, k: (0, k)),          # w3 tile
            pl.BlockSpec((1, OP), lambda b, k: (0, 0)),           # b3 (constant)
            pl.BlockSpec((1, OP), lambda b, k: (0, 0)),           # w4 (constant)
            pl.BlockSpec((1, 1), lambda b, k: (0, 0),
                         memory_space=pltpu.MemorySpace.SMEM),    # b4 scalar
        ],
        out_specs=pl.BlockSpec((TB, OUT_PAD), lambda b, k: (b, 0)),
        scratch_shapes=[pltpu.VMEM((TB, OP), jnp.float32)],
        compiler_params=pltpu.CompilerParams(
            dimension_semantics=("parallel", "arbitrary"),
            vmem_limit_bytes=32 * 1024 * 1024,
        ),
    )(x_p, w3_p, b3_p, w4_p, b4_p)

    return out_padded[:B, :num_outputs]


def hierarchical_model_forward(last_hidden_state, params, seq_length,
                               targets=None, eval_output=False):
    """Mirrors HierarchicalModel.forward (l2..l4 + concat + optional MSE loss).

    last_hidden_state: [B, seq_length, 768]  (output of the l1 backbone)
    """
    B = last_hidden_state.shape[0]
    # l2 dropout = identity in eval mode; reshape(-1, seq_length*768)
    x2 = last_hidden_state.reshape((B, seq_length * HIDDEN))
    num_outputs = params["w3"].shape[0] + 1
    output = hierarchical_head(x2, params["w3"], params["b3"],
                               params["w4"], params["b4"],
                               num_outputs=num_outputs)
    if eval_output:
        output = output[:, -1:]           # single_out only
    loss = None
    if targets is not None:
        mask = (targets > -999).astype(jnp.float32)
        diff = (output - targets.astype(jnp.float32)) * mask
        loss = jnp.sum(diff * diff) / jnp.maximum(jnp.sum(mask), 1.0)
    return output, loss


def init_params(key, seq_length, num_outputs, hidden=HIDDEN):
    K = seq_length * hidden
    O1 = num_outputs - 1
    k3w, k3b, k4w, k4b = jax.random.split(key, 4)
    # PyTorch Linear default init: U(-1/sqrt(fan_in), 1/sqrt(fan_in))
    bound3 = 1.0 / jnp.sqrt(float(K))
    bound4 = 1.0 / jnp.sqrt(float(O1))
    return {
        # w3 stored [O1, K]  (K on the lane axis; same layout as torch's weight)
        "w3": jax.random.uniform(k3w, (O1, K), jnp.float32, -bound3, bound3),
        "b3": jax.random.uniform(k3b, (O1,), jnp.float32, -bound3, bound3),
        "w4": jax.random.uniform(k4w, (O1,), jnp.float32, -bound4, bound4),
        "b4": jax.random.uniform(k4b, (), jnp.float32, -bound4, bound4),
    }


if __name__ == "__main__":
    seq_length = 8
    num_outputs = 5
    batch = 2

    key = jax.random.PRNGKey(0)
    k_params, k_hidden, k_targets = jax.random.split(key, 3)

    params = init_params(k_params, seq_length, num_outputs)

    # Synthetic stand-in for l1(...)['last_hidden_state']
    last_hidden_state = jax.random.normal(
        k_hidden, (batch, seq_length, HIDDEN), dtype=jnp.float32)

    targets = jax.random.normal(k_targets, (batch, num_outputs), dtype=jnp.float32)
    # mark one entry as "missing" (< -999) to exercise the mask path
    targets = targets.at[0, 0].set(-1000.0)

    output, loss = hierarchical_model_forward(
        last_hidden_state, params, seq_length, targets=targets, eval_output=False)
    jax.block_until_ready(output)
    jax.block_until_ready(loss)

    # Reference in plain JAX with matching bf16-input numerics (f32 accumulate).
    x2 = last_hidden_state.reshape((batch, seq_length * HIDDEN))
    x2b = x2.astype(jnp.bfloat16).astype(jnp.float32)
    w3b = params["w3"].astype(jnp.bfloat16).astype(jnp.float32)
    multi_ref = x2b @ w3b.T + params["b3"][None, :]
    single_ref = (jnp.sum(multi_ref * params["w4"][None, :], axis=-1, keepdims=True)
                  + params["b4"])
    ref = jnp.concatenate([multi_ref, single_ref], axis=1)
    assert output.shape == (batch, num_outputs)
    assert jnp.allclose(output, ref, atol=2e-3, rtol=2e-3), "mismatch vs reference"

    # eval_output path (single_out only)
    out_eval, _ = hierarchical_model_forward(
        last_hidden_state, params, seq_length, targets=None, eval_output=True)
    jax.block_until_ready(out_eval)
    assert out_eval.shape == (batch, 1)
    assert jnp.allclose(out_eval, ref[:, -1:], atol=2e-3, rtol=2e-3)

    print("KERNEL_OK")
</pallas_src>

<mosaic_0001>
module attributes {stable_mosaic.version = 11 : i64} {
  func.func @head_kernel(%arg0: i32, %arg1: i32, %arg2: memref<8x512xbf16, #tpu.memory_space<vmem>>, %arg3: memref<8x512xbf16, #tpu.memory_space<vmem>>, %arg4: memref<1x8xf32, #tpu.memory_space<vmem>>, %arg5: memref<1x8xf32, #tpu.memory_space<vmem>>, %arg6: memref<1x1xf32, #tpu.memory_space<smem>>, %arg7: memref<8x128xf32, #tpu.memory_space<vmem>>, %arg8: memref<8x8xf32, #tpu.memory_space<vmem>>) attributes {dimension_semantics = [#tpu.dimension_semantics<parallel>, #tpu.dimension_semantics<arbitrary>], iteration_bounds = array<i64: 1, 12>, scalar_prefetch = 0 : i64, scratch_operands = 1 : i64, tpu.core_type = #tpu.core_type<tc>, window_params = [{transform_indices = @transform_0, window_bounds = array<i64: 8, 512>}, {transform_indices = @transform_1, window_bounds = array<i64: 8, 512>}, {pipeline_mode = #tpu.pipeline_mode<synchronous>, transform_indices = @transform_2, window_bounds = array<i64: 1, 8>}, {pipeline_mode = #tpu.pipeline_mode<synchronous>, transform_indices = @transform_3, window_bounds = array<i64: 1, 8>}, {transform_indices = @transform_4, window_bounds = array<i64: 1, 1>}, {transform_indices = @transform_5, window_bounds = array<i64: 8, 128>}]} {
    %c0_i32 = arith.constant 0 : i32
    %0 = arith.cmpi eq, %arg1, %c0_i32 : i32
    %1 = arith.extui %0 : i1 to i32
    %c0_i32_0 = arith.constant 0 : i32
    %2 = arith.cmpi ne, %1, %c0_i32_0 : i32
    scf.if %2 {
      %cst_9 = arith.constant 0.000000e+00 : f32
      %12 = vector.broadcast %cst_9 : f32 to vector<8x8xf32>
      %c0_10 = arith.constant 0 : index
      %c0_11 = arith.constant 0 : index
      %13 = vector.load %arg8[%c0_10, %c0_11] : memref<8x8xf32, #tpu.memory_space<vmem>>, vector<8x8xf32>
      tpu.vector_store %arg8[%c0_10, %c0_11], %12 {strides = array<i32>} : memref<8x8xf32, #tpu.memory_space<vmem>>, vector<8x8xf32>,
    } else {
    }
    %c0 = arith.constant 0 : index
    %c0_1 = arith.constant 0 : index
    %3 = vector.load %arg8[%c0, %c0_1] : memref<8x8xf32, #tpu.memory_space<vmem>>, vector<8x8xf32>
    %c0_2 = arith.constant 0 : index
    %c0_3 = arith.constant 0 : index
    %4 = vector.load %arg2[%c0_2, %c0_3] : memref<8x512xbf16, #tpu.memory_space<vmem>>, vector<8x512xbf16>
    %c0_4 = arith.constant 0 : index
    %c0_5 = arith.constant 0 : index
    %5 = vector.load %arg3[%c0_4, %c0_5] : memref<8x512xbf16, #tpu.memory_space<vmem>>, vector<8x512xbf16>
    %cst = arith.constant dense<0.000000e+00> : vector<8x8xf32>
    %6 = tpu.matmul %4, %5, %cst {dimension_numbers = #tpu.dot_dimension_numbers<[1], [1], [0], [0], [0, 0, 1, 0], [], []>} : vector<8x512xbf16>, vector<8x512xbf16>, vector<8x8xf32> -> vector<8x8xf32>
    %7 = arith.addf %3, %6 : vector<8x8xf32>
    %c0_6 = arith.constant 0 : index
    %c0_7 = arith.constant 0 : index
    %8 = vector.load %arg8[%c0_6, %c0_7] : memref<8x8xf32, #tpu.memory_space<vmem>>, vector<8x8xf32>
    tpu.vector_store %arg8[%c0_6, %c0_7], %7 {strides = array<i32>} : memref<8x8xf32, #tpu.memory_space<vmem>>, vector<8x8xf32>,
    %c11_i32 = arith.constant 11 : i32
    %9 = arith.cmpi eq, %arg1, %c11_i32 : i32
    %10 = arith.extui %9 : i1 to i32
    %c0_i32_8 = arith.constant 0 : i32
    %11 = arith.cmpi ne, %10, %c0_i32_8 : i32
    scf.if %11 {
      %c0_9 = arith.constant 0 : index
      %c0_10 = arith.constant 0 : index
      %12 = vector.load %arg8[%c0_9, %c0_10] : memref<8x8xf32, #tpu.memory_space<vmem>>, vector<8x8xf32>
      %c0_11 = arith.constant 0 : index
      %c0_12 = arith.constant 0 : index
      %13 = vector.load %arg4[%c0_11, %c0_12] : memref<1x8xf32, #tpu.memory_space<vmem>>, vector<1x8xf32>
      %14 = vector.broadcast %13 : vector<1x8xf32> to vector<8x8xf32>
      %15 = arith.addf %12, %14 : vector<8x8xf32>
      %c0_13 = arith.constant 0 : index
      %c0_14 = arith.constant 0 : index
      %16 = vector.load %arg5[%c0_13, %c0_14] : memref<1x8xf32, #tpu.memory_space<vmem>>, vector<1x8xf32>
      %17 = vector.broadcast %16 : vector<1x8xf32> to vector<8x8xf32>
      %18 = arith.mulf %15, %17 : vector<8x8xf32>
      %cst_15 = arith.constant dense<0.000000e+00> : vector<8xf32>
      %19 = vector.multi_reduction <add>, %18, %cst_15 [1] : vector<8x8xf32> to vector<8xf32>
      %20 = vector.shape_cast %19 : vector<8xf32> to vector<8x1xf32>
      %c0_16 = arith.constant 0 : index
      %c0_17 = arith.constant 0 : index
      %21 = memref.load %arg6[%c0_16, %c0_17] : memref<1x1xf32, #tpu.memory_space<smem>>
      %22 = vector.broadcast %21 : f32 to vector<8x1xf32>
      %23 = arith.addf %20, %22 : vector<8x1xf32>
      %24 = tpu.iota {dimensions = array<i32: 1>} : vector<8x8xi32>
      %c4_i32 = arith.constant 4 : i32
      %25 = vector.broadcast %c4_i32 : i32 to vector<8x8xi32>
      %26 = arith.cmpi eq, %24, %25 : vector<8x8xi32>
      %27 = vector.shape_cast %23 : vector<8x1xf32> to vector<8x1xf32>
      %28 = vector.broadcast %27 : vector<8x1xf32> to vector<8x8xf32>
      %29 = arith.select %26, %28, %15 : vector<8x8xi1>, vector<8x8xf32>
      %cst_18 = arith.constant 0.000000e+00 : f32
      %30 = vector.broadcast %cst_18 : f32 to vector<8x128xf32>
      %c0_19 = arith.constant 0 : index
      %c0_20 = arith.constant 0 : index
      %31 = vector.load %arg7[%c0_19, %c0_20] : memref<8x128xf32, #tpu.memory_space<vmem>>, vector<8x128xf32>
      tpu.vector_store %arg7[%c0_19, %c0_20], %30 {strides = array<i32>} : memref<8x128xf32, #tpu.memory_space<vmem>>, vector<8x128xf32>,
      %c0_21 = arith.constant 0 : index
      %c0_22 = arith.constant 0 : index
      %32 = vector.load %arg7[%c0_21, %c0_22] : memref<8x128xf32, #tpu.memory_space<vmem>>, vector<8x8xf32>
      tpu.vector_store %arg7[%c0_21, %c0_22], %29 {strides = array<i32>} : memref<8x128xf32, #tpu.memory_space<vmem>>, vector<8x8xf32>,
    } else {
    }
    return
  }
  func.func @transform_0(%arg0: i32, %arg1: i32) -> (i32, i32) {
    %c0_i32 = arith.constant 0 : i32
    return %arg0, %arg1 : i32, i32
  }
  func.func @transform_1(%arg0: i32, %arg1: i32) -> (i32, i32) {
    %c0_i32 = arith.constant 0 : i32
    %c0_i32_0 = arith.constant 0 : i32
    return %c0_i32, %arg1 : i32, i32
  }
  func.func @transform_2(%arg0: i32, %arg1: i32) -> (i32, i32) {
    %c0_i32 = arith.constant 0 : i32
    %c0_i32_0 = arith.constant 0 : i32
    %c0_i32_1 = arith.constant 0 : i32
    return %c0_i32, %c0_i32_0 : i32, i32
  }
  func.func @transform_3(%arg0: i32, %arg1: i32) -> (i32, i32) {
    %c0_i32 = arith.constant 0 : i32
    %c0_i32_0 = arith.constant 0 : i32
    %c0_i32_1 = arith.constant 0 : i32
    return %c0_i32, %c0_i32_0 : i32, i32
  }
  func.func @transform_4(%arg0: i32, %arg1: i32) -> (i32, i32) {
    %c0_i32 = arith.constant 0 : i32
    %c0_i32_0 = arith.constant 0 : i32
    %c0_i32_1 = arith.constant 0 : i32
    return %c0_i32, %c0_i32_0 : i32, i32
  }
  func.func @transform_5(%arg0: i32, %arg1: i32) -> (i32, i32) {
    %c0_i32 = arith.constant 0 : i32
    %c0_i32_0 = arith.constant 0 : i32
    return %arg0, %c0_i32 : i32, i32
  }
}

</mosaic_0001>

<llo_original>
// kernel: tpu_custom_call.1
$region0: #{tpu_custom_call.1}
  #allocation0 [shape = 'u32[]', space=smem, size = 0x4, offset = 0x4, fixed_abs, tag = 'smem constant byte address 0x4 - core index']
  #allocation1 [shape = 'u32[72,128]{1,0:T(1,128)}', space=vmem, size = 0x9000, scoped, tag = 'internal scratch']
  #allocation2 [shape = 'f32[8,8]{1,0:T(8,128)}', space=vmem, size = 0x1000, scoped, tag = 'scratch operand']
  #allocation3 [shape = 'f32[1,1]{1,0:T(1,128)S(6)}', space=smem, size = 0x200, scoped, tag = 'scoped memory for tpu_custom_call.1']
  %s0 = inlined_call_operand.hbm [shape: bf16[8,6144], index: 0, kind: input, shape index: {}]
  %s1 = inlined_call_operand.hbm [shape: bf16[8,6144], index: 1, kind: input, shape index: {}]
  %s2 = inlined_call_operand.vmem [shape: f32[1,8], index: 2, kind: input, shape index: {}]
  %s3 = inlined_call_operand.vmem [shape: f32[1,8], index: 3, kind: input, shape index: {}]
  %s4 = inlined_call_operand.<no memory space> [shape: f32[1,1], index: 4, kind: input, shape index: {}]
  %s5 = inlined_call_operand.hbm [shape: f32[8,128], index: 5, kind: output, shape index: {}]
  %s6 = sld [smem:[#allocation0]]
  $region69: #{tpu_custom_call.1} parent=0
    _
  %s8 = ssub.s32 1, %s6
  %s9 = scalar_select 0, %s8, %s6
  %10 = sst [smem:[#allocation3]] %s4
  $region1: #{tpu_custom_call.1} parent=0
    #allocation4 [shape = 'u8[16384]{0}', space=vmem, size = 0x4000, scoped, tag = 'input window, operand 0']
    #allocation5 [shape = 's32[2]{0}', space=sflag, size = 0x8, scoped, tag = 'scoped memory for tpu_custom_call.1']
    #allocation6 [shape = 's32[2]{0}', space=sflag, size = 0x8, scoped, tag = 'scoped memory for tpu_custom_call.1']
    #allocation7 [shape = 'u8[16384]{0}', space=vmem, size = 0x4000, scoped, tag = 'input window, operand 1']
    #allocation8 [shape = 's32[2]{0}', space=sflag, size = 0x8, scoped, tag = 'scoped memory for tpu_custom_call.1']
    #allocation9 [shape = 'u8[4096]{0}', space=vmem, size = 0x1000, scoped, tag = 'output window, operand 0, single buffered']
    %11 = vsyncpa [#allocation5], 0
    %s12 = scalar_lea.sflag [#allocation5], 1
    %13 = vsyncpa %s12, 0
    %14 = vsyncpa [#allocation8], 0
    %s15 = scalar_lea.sflag [#allocation8], 1
    %16 = vsyncpa %s15, 0
    %17 = vsyncpa [#allocation6], 0
    loop: start=0, step=1, limit=14
    $region2: #{tpu_custom_call.1} parent=1 // loop_pre_header
      _
    $region3: #{tpu_custom_call.1} parent=1 // loop_header
      %s19 = sphi 0, %s23
      %p20 = scmp.ge.s32.totalorder %s19, 14
      %s26 = sphi 0, %s38
      %s27 = sphi 0, %s34
      %s28 = sphi 0, %s26
      %s29 = sphi 0, %s27
      %s30 = sphi 0, %s28
      %s31 = sphi 0, %s29
      %s43 = sphi 0, %s45
      %s46 = sphi 0, %s43
      %s47 = sphi 0, %s46
      %s63 = sphi 0, %s47
      %s69 = sphi 0, %s71
      %s72 = sphi 0, %s69
      %s73 = sphi 0, %s72
      %s89 = sphi 0, %s73
      %s93 = sphi 0, %s93
      %s95 = sphi 0, %s93
      %s96 = sphi 0, %s95
      %s110 = sphi 0, %s96
      %s114 = sphi 0, %s114
      %s116 = sphi 0, %s114
      %s117 = sphi 0, %s116
      %s131 = sphi 0, %s117
      %s135 = sphi 0, %s135
      %s137 = sphi 0, %s135
      %s138 = sphi 0, %s137
      %s152 = sphi 0, %s138
      %s158 = sphi 0, %s160
      %s161 = sphi 0, %s158
      %s162 = sphi 0, %s161
      %s178 = sphi 0, %s162
    $region4: #{tpu_custom_call.1} parent=1 // loop_header_branch
      %22 = sbr.rel (%p20) target = $region8
    $region5: #{tpu_custom_call.1} parent=1 // loop_body
      %s24 = ssub.s32 %s19, 1
      %s25 = ssub.s32 %s19, 2
      %s32 = sadd.s32 1, %s27
      %p33 = scmp.ge.s32.totalorder %s32, 12
      %s34 = scalar_select %p33, 0, %s32
      %s35 = sadd.s32 1, %s26
      %s36 = scalar_select %p33, %s35, %s26
      %p37 = scmp.ge.s32.totalorder %s36, 1
      %s38 = scalar_select %p37, 0, %s36
      %s39 = ssub.s32 %s26, %s38
      %s40 = ssub.s32 %s27, %s34
      %s41 = sor.u32 %s39, %s40
      %p42 = scmp.eq.s32.totalorder %s41, 0
      %s44 = sadd.s32 %s43, 1
      %s45 = scalar_select %p42, %s43, %s44
      %p48 = pneg %p42
      %p49 = scmp.eq.s32.totalorder %s19, 11
      %p50 = por %p48, %p49
      %p51 = scmp.ne.s32.totalorder %s43, %s46
      %p52 = scmp.eq.s32.totalorder %s19, 0
      %p53 = por %p51, %p52
      %p54 = scmp.ne.s32.totalorder %s43, %s46
      %p55 = scmp.eq.s32.totalorder %s24, 11
      %p56 = por %p54, %p55
      %p57 = scmp.ne.s32.totalorder %s46, %s47
      %p58 = scmp.eq.s32.totalorder %s24, 0
      %p59 = por %p57, %p58
      %p60 = scmp.ne.s32.totalorder %s46, %s47
      %p61 = scmp.eq.s32.totalorder %s25, 11
      %p62 = por %p60, %p61
      %p64 = scmp.ne.s32.totalorder %s47, %s63
      %p65 = scmp.eq.s32.totalorder %s25, 0
      %p66 = por %p64, %p65
      %s67 = ssub.s32 %s27, %s34
      %p68 = scmp.eq.s32.totalorder %s67, 0
      %s70 = sadd.s32 %s69, 1
      %s71 = scalar_select %p68, %s69, %s70
      %p74 = pneg %p68
      %p75 = scmp.eq.s32.totalorder %s19, 11
      %p76 = por %p74, %p75
      %p77 = scmp.ne.s32.totalorder %s69, %s72
      %p78 = scmp.eq.s32.totalorder %s19, 0
      %p79 = por %p77, %p78
      %p80 = scmp.ne.s32.totalorder %s69, %s72
      %p81 = scmp.eq.s32.totalorder %s24, 11
      %p82 = por %p80, %p81
      %p83 = scmp.ne.s32.totalorder %s72, %s73
      %p84 = scmp.eq.s32.totalorder %s24, 0
      %p85 = por %p83, %p84
      %p86 = scmp.ne.s32.totalorder %s72, %s73
      %p87 = scmp.eq.s32.totalorder %s25, 11
      %p88 = por %p86, %p87
      %p90 = scmp.ne.s32.totalorder %s73, %s89
      %p91 = scmp.eq.s32.totalorder %s25, 0
      %p92 = por %p90, %p91
      %s94 = sadd.s32 %s93, 1
      %p97 = scmp.eq.s32.totalorder %s19, 11
      %p98 = scmp.ne.s32.totalorder %s93, %s95
      %p99 = scmp.eq.s32.totalorder %s19, 0
      %p100 = por %p98, %p99
      %p101 = scmp.ne.s32.totalorder %s93, %s95
      %p102 = scmp.eq.s32.totalorder %s24, 11
      %p103 = por %p101, %p102
      %p104 = scmp.ne.s32.totalorder %s95, %s96
      %p105 = scmp.eq.s32.totalorder %s24, 0
      %p106 = por %p104, %p105
      %p107 = scmp.ne.s32.totalorder %s95, %s96
      %p108 = scmp.eq.s32.totalorder %s25, 11
      %p109 = por %p107, %p108
      %p111 = scmp.ne.s32.totalorder %s96, %s110
      %p112 = scmp.eq.s32.totalorder %s25, 0
      %p113 = por %p111, %p112
      %s115 = sadd.s32 %s114, 1
      %p118 = scmp.eq.s32.totalorder %s19, 11
      %p119 = scmp.ne.s32.totalorder %s114, %s116
      %p120 = scmp.eq.s32.totalorder %s19, 0
      %p121 = por %p119, %p120
      %p122 = scmp.ne.s32.totalorder %s114, %s116
      %p123 = scmp.eq.s32.totalorder %s24, 11
      %p124 = por %p122, %p123
      %p125 = scmp.ne.s32.totalorder %s116, %s117
      %p126 = scmp.eq.s32.totalorder %s24, 0
      %p127 = por %p125, %p126
      %p128 = scmp.ne.s32.totalorder %s116, %s117
      %p129 = scmp.eq.s32.totalorder %s25, 11
      %p130 = por %p128, %p129
      %p132 = scmp.ne.s32.totalorder %s117, %s131
      %p133 = scmp.eq.s32.totalorder %s25, 0
      %p134 = por %p132, %p133
      %s136 = sadd.s32 %s135, 1
      %p139 = scmp.eq.s32.totalorder %s19, 11
      %p140 = scmp.ne.s32.totalorder %s135, %s137
      %p141 = scmp.eq.s32.totalorder %s19, 0
      %p142 = por %p140, %p141
      %p143 = scmp.ne.s32.totalorder %s135, %s137
      %p144 = scmp.eq.s32.totalorder %s24, 11
      %p145 = por %p143, %p144
      %p146 = scmp.ne.s32.totalorder %s137, %s138
      %p147 = scmp.eq.s32.totalorder %s24, 0
      %p148 = por %p146, %p147
      %p149 = scmp.ne.s32.totalorder %s137, %s138
      %p150 = scmp.eq.s32.totalorder %s25, 11
      %p151 = por %p149, %p150
      %p153 = scmp.ne.s32.totalorder %s138, %s152
      %p154 = scmp.eq.s32.totalorder %s25, 0
      %p155 = por %p153, %p154
      %s156 = ssub.s32 %s26, %s38
      %p157 = scmp.eq.s32.totalorder %s156, 0
      %s159 = sadd.s32 %s158, 1
      %s160 = scalar_select %p157, %s158, %s159
      %p163 = pneg %p157
      %p164 = scmp.eq.s32.totalorder %s19, 11
      %p165 = por %p163, %p164
      %p166 = scmp.ne.s32.totalorder %s158, %s161
      %p167 = scmp.eq.s32.totalorder %s19, 0
      %p168 = por %p166, %p167
      %p169 = scmp.ne.s32.totalorder %s158, %s161
      %p170 = scmp.eq.s32.totalorder %s24, 11
      %p171 = por %p169, %p170
      %p172 = scmp.ne.s32.totalorder %s161, %s162
      %p173 = scmp.eq.s32.totalorder %s24, 0
      %p174 = por %p172, %p173
      %p175 = scmp.ne.s32.totalorder %s161, %s162
      %p176 = scmp.eq.s32.totalorder %s25, 11
      %p177 = por %p175, %p176
      %p179 = scmp.ne.s32.totalorder %s162, %s178
      %p180 = scmp.eq.s32.totalorder %s25, 0
      %p181 = por %p179, %p180
      %p182 = scmp.le.s32.totalorder 1, %s19
      %p183 = scmp.lt.s32.totalorder %s19, 13
      %p184 = pnand %p182, %p183
      %p185 = pneg %p184
      // Predicated region
      $region9: #{tpu_custom_call.1} parent=5 // pred_check
        _
      $region10: #{tpu_custom_call.1} parent=5 // pred_check_branch
        %187 = sbr.rel (%p184) target = $region12
      $region11: #{tpu_custom_call.1} parent=5 // pred_region
        %s188 = ssub.s32 %s19, 1
        // Predicated region
        $region13: #{tpu_custom_call.1} parent=11 // pred_check
          %p189 = pneg %p106
        $region14: #{tpu_custom_call.1} parent=11 // pred_check_branch
          %191 = sbr.rel (%p189) target = $region16
        $region15: #{tpu_custom_call.1} parent=11 // pred_region
          _
        $region16: #{tpu_custom_call.1} parent=11 // pred_fallthru
          _
        // Predicated region
        $region17: #{tpu_custom_call.1} parent=11 // pred_check
          %p192 = pneg %p127
        $region18: #{tpu_custom_call.1} parent=11 // pred_check_branch
          %194 = sbr.rel (%p192) target = $region20
        $region19: #{tpu_custom_call.1} parent=11 // pred_region
          _
        $region20: #{tpu_custom_call.1} parent=11 // pred_fallthru
          _
        // Predicated region
        $region21: #{tpu_custom_call.1} parent=11 // pred_check
          %p195 = pneg %p148
        $region22: #{tpu_custom_call.1} parent=11 // pred_check_branch
          %197 = sbr.rel (%p195) target = $region24
        $region23: #{tpu_custom_call.1} parent=11 // pred_region
          _
        $region24: #{tpu_custom_call.1} parent=11 // pred_fallthru
          _
      $region12: #{tpu_custom_call.1} parent=5 // pred_fallthru
        _
      %p198 = scmp.lt.s32.totalorder %s19, 12
      // Predicated region
      $region25: #{tpu_custom_call.1} parent=5 // pred_check
        %p199 = pneg %p198
      $region26: #{tpu_custom_call.1} parent=5 // pred_check_branch
        %201 = sbr.rel (%p199) target = $region28
      $region27: #{tpu_custom_call.1} parent=5 // pred_region
        // Predicated region
        $region29: #{tpu_custom_call.1} parent=27 // pred_check
          %p202 = pneg %p53
        $region30: #{tpu_custom_call.1} parent=27 // pred_check_branch
          %204 = sbr.rel (%p202) target = $region32
        $region31: #{tpu_custom_call.1} parent=27 // pred_region
          %s205 = sand.u32 %s43, 1
          %s206 = scalar_lea.sflag [#allocation5], %s205
          %s207 = sand.u32 %s43, 1
          %s208 = smul.addr %s207, 16
          %s209 = scalar_lea.vmem [#allocation4], %s208
          %s210 = smul.u32 4, %s27
          %212 = vsyncadd %s206, 0
          %s213 = smul.addr %s26, 48
          %s214 = sadd.s32 %s210, %s213
          %s215 = smul.addr %s214, 4
          %s216 = scalar_lea.hbm %s0, %s215
          %s218 = sshll.u32 %s216, 4
          %s219 = int_to_ptr.hbm [resolvable:$true] %s218
          %s220 = sshll.u32 %s209, 4
          %s221 = int_to_ptr.vmem [resolvable:$true] %s220
          %223 = dma.hbm_to_vmem [thread:$0]  %s219, 256, %s221, %s206
        $region32: #{tpu_custom_call.1} parent=27 // pred_fallthru
          _
        // Predicated region
        $region33: #{tpu_custom_call.1} parent=27 // pred_check
          %p224 = pneg %p79
        $region34: #{tpu_custom_call.1} parent=27 // pred_check_branch
          %226 = sbr.rel (%p224) target = $region36
        $region35: #{tpu_custom_call.1} parent=27 // pred_region
          %s227 = sand.u32 %s69, 1
          %s228 = scalar_lea.sflag [#allocation8], %s227
          %s229 = sand.u32 %s69, 1
          %s230 = smul.addr %s229, 16
          %s231 = scalar_lea.vmem [#allocation7], %s230
          %s232 = smul.u32 4, %s27
          %234 = vsyncadd %s228, 0
          %s235 = smul.addr %s232, 4
          %s236 = scalar_lea.hbm %s1, %s235
          %s238 = sshll.u32 %s236, 4
          %s239 = int_to_ptr.hbm [resolvable:$true] %s238
          %s240 = sshll.u32 %s231, 4
          %s241 = int_to_ptr.vmem [resolvable:$true] %s240
          %243 = dma.hbm_to_vmem [thread:$0]  %s239, 256, %s241, %s228
        $region36: #{tpu_custom_call.1} parent=27 // pred_fallthru
          _
      $region28: #{tpu_custom_call.1} parent=5 // pred_fallthru
        _
      %p244 = scmp.le.s32.totalorder 1, %s19
      %p245 = scmp.lt.s32.totalorder %s19, 13
      %p246 = pnand %p244, %p245
      %p247 = pneg %p246
      // Predicated region
      $region37: #{tpu_custom_call.1} parent=5 // pred_check
        _
      $region38: #{tpu_custom_call.1} parent=5 // pred_check_branch
        %249 = sbr.rel (%p246) target = $region40
      $region39: #{tpu_custom_call.1} parent=5 // pred_region
        %s250 = ssub.s32 %s19, 1
        %s251 = sand.u32 %s46, 1
        %s252 = scalar_lea.sflag [#allocation5], %s251
        %s253 = sand.u32 %s46, 1
        %s254 = smul.addr %s253, 16
        %s255 = scalar_lea.vmem [#allocation4], %s254
        // Predicated region
        $region41: #{tpu_custom_call.1} parent=39 // pred_check
          %p256 = pneg %p59
        $region42: #{tpu_custom_call.1} parent=39 // pred_check_branch
          %258 = sbr.rel (%p256) target = $region44
        $region43: #{tpu_custom_call.1} parent=39 // pred_region
          %260 = dma.done %s252, 256
        $region44: #{tpu_custom_call.1} parent=39 // pred_fallthru
          _
        %s261 = sand.u32 %s72, 1
        %s262 = scalar_lea.sflag [#allocation8], %s261
        %s263 = sand.u32 %s72, 1
        %s264 = smul.addr %s263, 16
        %s265 = scalar_lea.vmem [#allocation7], %s264
        // Predicated region
        $region45: #{tpu_custom_call.1} parent=39 // pred_check
          %p266 = pneg %p85
        $region46: #{tpu_custom_call.1} parent=39 // pred_check_branch
          %268 = sbr.rel (%p266) target = $region48
        $region47: #{tpu_custom_call.1} parent=39 // pred_region
          %270 = dma.done %s262, 256
        $region48: #{tpu_custom_call.1} parent=39 // pred_fallthru
          _
        %s271 = sand.u32 %s46, 1
        %s272 = scalar_lea.sflag [#allocation5], %s271
        %s273 = sand.u32 %s46, 1
        %s274 = smul.addr %s273, 16
        %s275 = scalar_lea.vmem [#allocation4], %s274
        %p276 = pneg %p59
        %p277 = pneg %p56
        %s278 = sand.u32 %s72, 1
        %s279 = scalar_lea.sflag [#allocation8], %s278
        %s280 = sand.u32 %s72, 1
        %s281 = smul.addr %s280, 16
        %s282 = scalar_lea.vmem [#allocation7], %s281
        %p283 = pneg %p85
        %p284 = pneg %p82
        %p285 = pneg %p106
        %p286 = pneg %p103
        %p287 = pneg %p127
        %p288 = pneg %p124
        %p289 = pneg %p148
        %p290 = pneg %p145
        %p291 = pneg %p174
        %p292 = pneg %p171
        %s293 = smul.u32 4, %s29
        %s294 = smul.u32 4, %s29
        %p296 = scmp.eq.s32.totalorder %s29, 0
        // Predicated region
        $region49: #{tpu_custom_call.1} parent=39 // pred_check
          %p297 = pneg %p296
        $region50: #{tpu_custom_call.1} parent=39 // pred_check_branch
          %299 = sbr.rel (%p297) target = $region52
        $region51: #{tpu_custom_call.1} parent=39 // pred_region
          %vm300 = vcmask 64512
          %301 = vst.msk [vmem:[#allocation2] sm:$0xff] %vm300, 0.0
        $region52: #{tpu_custom_call.1} parent=39 // pred_fallthru
          _
        %v302 = vld [vmem:[#allocation2] sm:$0xff]
        %v303 = vld [vmem:[%s255] sm:$0xff]
        %v304 = vld [vmem:[%s255 + $0x8] sm:$0xff]
        %v305 = vld [vmem:[%s265] sm:$0xff]
        %v306 = vld [vmem:[%s265 + $0x8] sm:$0xff]
        %v309 = vunpack.c.l.b16 %v303
        %v310 = vunpack.c.h.b16 %v303
        %v311 = vunpack.c.l.b16 %v304
        %v312 = vunpack.c.h.b16 %v304
        %v313 = vpack.c.b16 %v309, %v309
        %v314 = vpack.c.b16 %v310, %v310
        %v315 = vpack.c.b16 %v311, %v311
        %v316 = vpack.c.b16 %v312, %v312
        %v323 = vunpack.c.l.b16 %v305
        %v324 = vunpack.c.h.b16 %v305
        %v325 = vunpack.c.l.b16 %v306
        %v326 = vunpack.c.h.b16 %v306
        %v327 = vpack.c.b16 %v323, %v323
        %v328 = vpack.c.b16 %v324, %v324
        %v329 = vpack.c.b16 %v325, %v325
        %v330 = vpack.c.b16 %v326, %v326
        %335 = vmatpush.bf16.xpose.msra.mxu0 0
        %336 = vmatpush.bf16.xpose.msra.mxu0 0
        %337 = vmatpush.bf16.xpose.msra.mxu0 0
        %338 = vmatpush.bf16.xpose.msra.mxu0 0
        %339 = vmatpush.bf16.xpose.msra.mxu0 0
        %340 = vmatpush.bf16.xpose.msra.mxu0 0
        %341 = vmatpush.bf16.xpose.msra.mxu0 0
        %342 = vmatpush.bf16.xpose.msra.mxu0 %v327
        %343 = vmatmul.bf16.gmra.mxu0 %v313
        %v344 = vpop.f32.mrf.mxu0
        %v345 = vadd.f32 0.0, %v344
        %v346 = vpop.f32.mrf.mxu0
        %347 = vdwg.mxu0
        %348 = vmatpush.bf16.xpose.msra.mxu0 0
        %349 = vmatpush.bf16.xpose.msra.mxu0 0
        %350 = vmatpush.bf16.xpose.msra.mxu0 0
        %351 = vmatpush.bf16.xpose.msra.mxu0 0
        %352 = vmatpush.bf16.xpose.msra.mxu0 0
        %353 = vmatpush.bf16.xpose.msra.mxu0 0
        %354 = vmatpush.bf16.xpose.msra.mxu0 0
        %355 = vmatpush.bf16.xpose.msra.mxu0 %v328
        %356 = vmatmul.bf16.gmra.mxu0 %v314
        %v357 = vpop.f32.mrf.mxu0
        %v358 = vadd.f32 %v345, %v357
        %v359 = vpop.f32.mrf.mxu0
        %360 = vdwg.mxu0
        %361 = vmatpush.bf16.xpose.msra.mxu0 0
        %362 = vmatpush.bf16.xpose.msra.mxu0 0
        %363 = vmatpush.bf16.xpose.msra.mxu0 0
        %364 = vmatpush.bf16.xpose.msra.mxu0 0
        %365 = vmatpush.bf16.xpose.msra.mxu0 0
        %366 = vmatpush.bf16.xpose.msra.mxu0 0
        %367 = vmatpush.bf16.xpose.msra.mxu0 0
        %368 = vmatpush.bf16.xpose.msra.mxu0 %v329
        %369 = vmatmul.bf16.gmra.mxu0 %v315
        %v370 = vpop.f32.mrf.mxu0
        %v371 = vadd.f32 %v358, %v370
        %v372 = vpop.f32.mrf.mxu0
        %373 = vdwg.mxu0
        %374 = vmatpush.bf16.xpose.msra.mxu0 0
        %375 = vmatpush.bf16.xpose.msra.mxu0 0
        %376 = vmatpush.bf16.xpose.msra.mxu0 0
        %377 = vmatpush.bf16.xpose.msra.mxu0 0
        %378 = vmatpush.bf16.xpose.msra.mxu0 0
        %379 = vmatpush.bf16.xpose.msra.mxu0 0
        %380 = vmatpush.bf16.xpose.msra.mxu0 0
        %381 = vmatpush.bf16.xpose.msra.mxu0 %v330
        %382 = vmatmul.bf16.gmra.mxu0 %v316
        %v383 = vpop.f32.mrf.mxu0
        %v384 = vadd.f32 %v371, %v383
        %v385 = vpop.f32.mrf.mxu0
        %386 = vdwg.mxu0
        %v387 = vadd.f32 %v302, %v384
        %vm388 = vcmask 64512
        %389 = vst.msk [vmem:[#allocation2] sm:$0xff] %vm388, %v387
        %p390 = scmp.eq.s32.totalorder %s29, 11
        // Predicated region
        $region53: #{tpu_custom_call.1} parent=39 // pred_check
          %p391 = pneg %p390
        $region54: #{tpu_custom_call.1} parent=39 // pred_check_branch
          %393 = sbr.rel (%p391) target = $region56
        $region55: #{tpu_custom_call.1} parent=39 // pred_region
          %v394 = vld [vmem:[#allocation2] sm:$0xff]
          %v395 = vld [vmem:[%s2] sm:$0x1]
          %v397 = vperm.slane %v395, 0
          %v399 = vadd.f32 %v394, %v397
          %v400 = vld [vmem:[%s3] sm:$0x1]
          %v402 = vperm.slane %v400, 0
          %v404 = vmul.f32 %v399, %v402
          %v405 = vsel %vm388, %v404, 0.0
          %406 = vadd.xlane.f32.xlu0 %v405
          %v407 = vpop.xlane.xlu0 %406
          %s408 = sld [smem:[#allocation3]]
          %v409 = vstv %s408
          %v410 = vadd.f32 %v407, %v409
          %v411 = vlaneseq
          %v412 = vand.u32 %v411, 127
          %vm413 = vcmp.eq.s32.totalorder %v412, 4
          %v414 = vsel %vm413, %v410, %v399
          %415 = vst [vmem:[#allocation9] sm:$0xff] 0.0
          %416 = vst.msk [vmem:[#allocation9] sm:$0xff] %vm388, %v414
        $region56: #{tpu_custom_call.1} parent=39 // pred_fallthru
          _
        // Predicated region
        $region57: #{tpu_custom_call.1} parent=39 // pred_check
          %p417 = pneg %p171
        $region58: #{tpu_custom_call.1} parent=39 // pred_check_branch
          %419 = sbr.rel (%p417) target = $region60
        $region59: #{tpu_custom_call.1} parent=39 // pred_region
          %421 = vsyncadd [#allocation6], 0
          %s422 = smul.addr %s28, 8
          %s423 = scalar_lea.hbm %s5, %s422
          %s425 = sshll.u32 [#allocation9], 4
          %s426 = int_to_ptr.vmem [resolvable:$true] %s425
          %s427 = sshll.u32 %s423, 4
          %s428 = int_to_ptr.hbm [resolvable:$true] %s427
          %430 = dma.vmem_to_hbm [thread:$0]  %s426, 128, %s428, [#allocation6]
        $region60: #{tpu_custom_call.1} parent=39 // pred_fallthru
          _
        // Predicated region
        $region61: #{tpu_custom_call.1} parent=39 // pred_check
          %p431 = pneg %p171
        $region62: #{tpu_custom_call.1} parent=39 // pred_check_branch
          %433 = sbr.rel (%p431) target = $region64
        $region63: #{tpu_custom_call.1} parent=39 // pred_region
          %435 = dma.done [#allocation6], 128
        $region64: #{tpu_custom_call.1} parent=39 // pred_fallthru
          _
      $region40: #{tpu_custom_call.1} parent=5 // pred_fallthru
        _
      %p436 = scmp.le.s32.totalorder 2, %s19
      // Predicated region
      $region65: #{tpu_custom_call.1} parent=5 // pred_check
        %p437 = pneg %p436
      $region66: #{tpu_custom_call.1} parent=5 // pred_check_branch
        %439 = sbr.rel (%p437) target = $region68
      $region67: #{tpu_custom_call.1} parent=5 // pred_region
        %s440 = ssub.s32 %s19, 2
      $region68: #{tpu_custom_call.1} parent=5 // pred_fallthru
        _
    $region6: #{tpu_custom_call.1} parent=1 // loop_footer
      %s23 = sadd.s32 1, %s19
    $region7: #{tpu_custom_call.1} parent=1 // loop_footer_branch
      %18 = sbr.rel target = $region3
    $region8: #{tpu_custom_call.1} parent=1 // loop_exit
      _
    %441 = vsyncpa [#allocation5], 1
    %s442 = scalar_lea.sflag [#allocation5], 1
    %443 = vsyncpa %s442, 1
    %444 = vsyncpa [#allocation8], 1
    %s445 = scalar_lea.sflag [#allocation8], 1
    %446 = vsyncpa %s445, 1
    %447 = vsyncpa [#allocation6], 1
    %s448 = scalar_lea.sflag [#allocation6], 1
    %449 = vsyncpa %s448, 1

</llo_original>
